<compile_context>
chip_gen: v7x
topology: tpu7x:2x2x1
jax: 0.10.0
libtpu: 0.0.40
codegen_flags: <defaults>
</compile_context>

<pallas_src>
import functools

import jax
import jax.numpy as jnp
from jax.experimental import pallas as pl
from jax.experimental.pallas import tpu as pltpu


_VMEM_LIMIT_BYTES = 32 * 1024 * 1024       # explicit scoped-VMEM limit, safe on v5e/v6e/v7x
_TILE_BYTE_BUDGET = 4 * 1024 * 1024        # per x-block budget for the streaming passes
_FUSED_SLAB_F32_BYTES = 6 * 1024 * 1024    # fused path if C*S*4 bytes fits this budget


def _channel_conv_sigmoid(m, w_ref, k_size, c):
    """k-tap zero-padded Conv1d along the channel (sublane) axis + sigmoid.

    m: (C, L) f32 with the per-channel mean replicated across lanes.
    Implemented as masked sublane rolls (VPU/XLU work only; no MXU, no (C, C) band matrix).
    """
    pad = (k_size - 1) // 2
    row = jax.lax.broadcasted_iota(jnp.int32, m.shape, 0)
    y = jnp.zeros_like(m)
    for t in range(k_size):                       # static, tiny
        sh = pad - t                              # y[ch] += w[t] * m[ch + t - pad]
        shifted = m if sh % c == 0 else pltpu.roll(m, shift=sh % c, axis=0)
        valid = (row >= sh) & (row < c + sh)      # zero the wrapped (padding) taps
        y = y + w_ref[t] * jnp.where(valid, shifted, 0.0)
    return jax.nn.sigmoid(y)


def _make_fused_kernel(true_s, k_size, c):
    """Single pass: spatial mean -> channel conv -> sigmoid -> scale, one batch per step."""
    inv_s = 1.0 / float(true_s)

    def kernel(w_ref, x_ref, o_ref):
        # w_ref: (k,) f32 taps in SMEM; x_ref / o_ref: (1, C, S) blocks.
        x = x_ref[0]                                                    # (C, S)
        sums = jnp.sum(x.astype(jnp.float32), axis=1, keepdims=True)    # (C, 1) f32
        m = jnp.broadcast_to(sums * inv_s, (c, 128))
        gate = _channel_conv_sigmoid(m, w_ref, k_size, c)[:, 0:1]       # (C, 1) f32
        o_ref[0] = (x * gate.astype(x.dtype)).astype(o_ref.dtype)

    return kernel


def _make_gate_kernel(true_s, ts, k_size, c, needs_mask):
    """Pass 1: spatial mean (tiled over S) -> Conv1d along C -> sigmoid gate (B, C, 128)."""
    inv_s = 1.0 / float(true_s)

    def kernel(w_ref, x_ref, gate_ref, acc_ref):
        # w_ref:    (k,)        f32 conv taps, resident in SMEM
        # x_ref:    (1, C, TS)  one spatial chunk of one batch element
        # gate_ref: (1, C, 128) f32 gate (channel on sublanes, lane-broadcast)
        # acc_ref:  (C, 1)      f32 running spatial sum (persists over the S axis)
        j = pl.program_id(1)

        @pl.when(j == 0)
        def _init():
            acc_ref[...] = jnp.zeros_like(acc_ref)

        x = x_ref[0].astype(jnp.float32)                      # (C, TS)
        if needs_mask:
            # Unpadded input: the last S block is a partial edge block whose out-of-range
            # lanes hold undefined VMEM data -- mask them out of the reduction.
            lane = jax.lax.broadcasted_iota(jnp.int32, (c, ts), 1)
            x = jnp.where(lane + j * ts < true_s, x, 0.0)
        acc_ref[...] += jnp.sum(x, axis=1, keepdims=True)

        @pl.when(j == pl.num_programs(1) - 1)
        def _finalize():
            # Mean over the *true* spatial size, then the k-tap channel conv + sigmoid.
            m = jnp.broadcast_to(acc_ref[...] * inv_s, (c, 128))
            gate_ref[0] = _channel_conv_sigmoid(m, w_ref, k_size, c)

    return kernel


def _scale_kernel(x_ref, gate_ref, o_ref):
    """Pass 2: out = x * gate (gate broadcast over the spatial lanes)."""
    g = gate_ref[0, :, 0:1]                                   # (C, 1) f32
    x = x_ref[0]                                              # (C, TS) input dtype
    o_ref[0] = (x * g.astype(x.dtype)).astype(o_ref.dtype)


def _pick_spatial_tile(c, s, itemsize, max_tile_lanes=None,
                       tile_byte_budget=_TILE_BYTE_BUDGET):
    """Lane-dense spatial tile: multiple of 128, within the byte budget, and balanced so the
    last (partial) tile is nearly full.  Returns TS == S when a single tile covers it all."""
    max_ts = max(128, (tile_byte_budget // (c * itemsize)) // 128 * 128)
    if max_tile_lanes is not None:
        max_ts = min(max_ts, max(128, (max_tile_lanes // 128) * 128))
    if max_ts >= s:
        return s                                   # block last dim == full dim: always legal
    n_tiles = -(-s // max_ts)
    ts = ((-(-s // n_tiles) + 127) // 128) * 128   # balanced tile, rounded up to 128 lanes
    return min(ts, max_ts)


@functools.partial(
    jax.jit,
    static_argnames=("k_size", "max_tile_lanes", "force_two_pass", "in_place"))
def cross_slice_attention(x, conv_w, k_size=3, max_tile_lanes=None,
                          force_two_pass=False, in_place=False):
    """x: (B, C, D, H, W); conv_w: (k_size,) Conv1d weight (squeezed), no bias.

    in_place=True adds input_output_aliases so the result reuses x's HBM buffer when the
    caller donates x (otherwise XLA inserts a defensive copy; semantics are unchanged).
    """
    b, c, d, h, w = x.shape
    s = d * h * w
    itemsize = jnp.dtype(x.dtype).itemsize

    x3 = x.reshape(b, c, s)                        # contiguous reshape: bitcast, no HBM pass
    w_taps = conv_w.reshape(-1).astype(jnp.float32)

    # ---- Fused single-pass fast path: one (C, S) slab per grid step ---------------------
    # Reads x once and writes out once (vs read/read/write for the two-pass path).
    if (not force_two_pass) and c * s * 4 <= _FUSED_SLAB_F32_BYTES:
        out3 = pl.pallas_call(
            _make_fused_kernel(s, k_size, c),
            out_shape=jax.ShapeDtypeStruct((b, c, s), x.dtype),
            grid_spec=pltpu.PrefetchScalarGridSpec(
                num_scalar_prefetch=0,
                grid=(b,),
                in_specs=[
                    pl.BlockSpec(memory_space=pltpu.MemorySpace.SMEM),   # conv taps (k,)
                    pl.BlockSpec((1, c, s), lambda i: (i, 0, 0)),        # full batch slab
                ],
                out_specs=pl.BlockSpec((1, c, s), lambda i: (i, 0, 0)),
            ),
            compiler_params=pltpu.CompilerParams(
                dimension_semantics=("parallel",),
                vmem_limit_bytes=_VMEM_LIMIT_BYTES,
            ),
            input_output_aliases={1: 0} if in_place else {},
        )(w_taps, x3)
        return out3.reshape(b, c, d, h, w)

    # ---- Two streaming passes over the unpadded (B, C, S) view --------------------------
    ts = _pick_spatial_tile(c, s, itemsize, max_tile_lanes)
    num_tiles = pl.cdiv(s, ts)
    needs_mask = (s % ts) != 0                      # last block is a partial edge block

    # Pass 1: per-(b, c) mean -> channel conv -> sigmoid gate, (B, C, 128) f32.
    # TODO(synk): on v7x with B == 1 (or odd B), split the S reduction over an extra
    # "parallel" grid axis so both TensorCores contribute to pass 1 (2-way partial sums
    # combined in a tiny epilogue).
    gate = pl.pallas_call(
        _make_gate_kernel(s, ts, k_size, c, needs_mask),
        out_shape=jax.ShapeDtypeStruct((b, c, 128), jnp.float32),
        grid_spec=pltpu.PrefetchScalarGridSpec(
            num_scalar_prefetch=0,
            grid=(b, num_tiles),
            in_specs=[
                pl.BlockSpec(memory_space=pltpu.MemorySpace.SMEM),       # conv taps (k,)
                pl.BlockSpec((1, c, ts), lambda i, j: (i, 0, j)),        # x spatial chunk
            ],
            out_specs=pl.BlockSpec((1, c, 128), lambda i, j: (i, 0, 0)),
            scratch_shapes=[pltpu.VMEM((c, 1), jnp.float32)],
        ),
        compiler_params=pltpu.CompilerParams(
            dimension_semantics=("parallel", "arbitrary"),
            vmem_limit_bytes=_VMEM_LIMIT_BYTES,
        ),
    )(w_taps, x3)

    # Pass 2: out = x * gate.  Out-of-range stores of the partial last block are dropped
    # by Mosaic, so no output padding / final slice is needed.
    out3 = pl.pallas_call(
        _scale_kernel,
        out_shape=jax.ShapeDtypeStruct((b, c, s), x.dtype),
        grid_spec=pltpu.PrefetchScalarGridSpec(
            num_scalar_prefetch=0,
            grid=(b, num_tiles),
            in_specs=[
                pl.BlockSpec((1, c, ts), lambda i, j: (i, 0, j)),        # x spatial chunk
                pl.BlockSpec((1, c, 128), lambda i, j: (i, 0, 0)),       # gate, resident per b
            ],
            out_specs=pl.BlockSpec((1, c, ts), lambda i, j: (i, 0, j)),
        ),
        compiler_params=pltpu.CompilerParams(
            dimension_semantics=("parallel", "parallel"),
            vmem_limit_bytes=_VMEM_LIMIT_BYTES,
        ),
        input_output_aliases={0: 0} if in_place else {},
    )(x3, gate)

    return out3.reshape(b, c, d, h, w)


def _reference(x, conv_w):
    """Pure-JAX reference of the PyTorch forward."""
    b, c, d, h, w = x.shape
    k = conv_w.shape[0]
    pad = (k - 1) // 2
    m = x.astype(jnp.float32).mean(axis=(2, 3, 4))               # (B, C)
    mp = jnp.pad(m, ((0, 0), (pad, pad)))                        # zero-padded Conv1d
    y = jnp.stack(
        [jnp.sum(mp[:, i:i + k] * conv_w[None, :], axis=-1) for i in range(c)],
        axis=1,
    )                                                            # (B, C)
    gate = jax.nn.sigmoid(y)
    return x * gate[:, :, None, None, None].astype(x.dtype)


if __name__ == "__main__":
    key = jax.random.PRNGKey(0)
    kx, kw = jax.random.split(key)

    # S = 4*16*15 = 960 is NOT a multiple of 128 -> exercises partial edge blocks.
    B, C, D, H, W = 2, 8, 4, 16, 15
    K = 3

    x = jax.random.normal(kx, (B, C, D, H, W), dtype=jnp.float32)
    # PyTorch Conv1d default init: U(-1/sqrt(fan_in), 1/sqrt(fan_in)), fan_in = K.
    bound = 1.0 / (K ** 0.5)
    conv_w = jax.random.uniform(kw, (K,), minval=-bound, maxval=bound, dtype=jnp.float32)

    ref = _reference(x, conv_w)

    # 1) default: fused single-pass path (the (C, S) slab easily fits VMEM).
    out = jax.block_until_ready(cross_slice_attention(x, conv_w, k_size=K))
    assert out.shape == x.shape
    assert jnp.allclose(out, ref, atol=1e-5, rtol=1e-5), "mismatch (fused) vs reference"

    # 2) two-pass path, small tile cap -> multi-tile S accumulation with a masked partial
    #    edge block (grid (2, 4), 256-lane tiles, last tile has 192 valid lanes).
    out = jax.block_until_ready(
        cross_slice_attention(x, conv_w, k_size=K, max_tile_lanes=256, force_two_pass=True))
    assert jnp.allclose(out, ref, atol=1e-5, rtol=1e-5), "mismatch (tiled) vs reference"

    # 3) two-pass path, single full-extent spatial tile (no masking needed).
    out = jax.block_until_ready(
        cross_slice_attention(x, conv_w, k_size=K, force_two_pass=True))
    assert jnp.allclose(out, ref, atol=1e-5, rtol=1e-5), "mismatch (1-tile) vs reference"

    # 4) in-place variant: pass-2 output aliases x's HBM buffer (XLA copies if not donated).
    out = jax.block_until_ready(
        cross_slice_attention(x, conv_w, k_size=K, max_tile_lanes=256,
                              force_two_pass=True, in_place=True))
    assert jnp.allclose(out, ref, atol=1e-5, rtol=1e-5), "mismatch (in-place) vs reference"

    print("KERNEL_OK")
</pallas_src>

<mosaic_0001>
module attributes {stable_mosaic.version = 11 : i64} {
  func.func @kernel(%arg0: i32, %arg1: memref<3xf32, #tpu.memory_space<smem>>, %arg2: memref<1x8x960xf32, #tpu.memory_space<vmem>>, %arg3: memref<1x8x960xf32, #tpu.memory_space<vmem>>) attributes {dimension_semantics = [#tpu.dimension_semantics<parallel>], iteration_bounds = array<i64: 2>, scalar_prefetch = 0 : i64, scratch_operands = 0 : i64, tpu.core_type = #tpu.core_type<tc>, window_params = [{transform_indices = @transform_0, window_bounds = array<i64: 3>}, {transform_indices = @transform_1, window_bounds = array<i64: 1, 8, 960>}, {transform_indices = @transform_2, window_bounds = array<i64: 1, 8, 960>}]} {
    %c0 = arith.constant 0 : index
    %c0_0 = arith.constant 0 : index
    %c0_1 = arith.constant 0 : index
    %0 = vector.load %arg2[%c0, %c0_0, %c0_1] : memref<1x8x960xf32, #tpu.memory_space<vmem>>, vector<1x8x960xf32>
    %1 = vector.shape_cast %0 : vector<1x8x960xf32> to vector<8x960xf32>
    %cst = arith.constant dense<0.000000e+00> : vector<8xf32>
    %2 = vector.multi_reduction <add>, %1, %cst [1] : vector<8x960xf32> to vector<8xf32>
    %3 = vector.shape_cast %2 : vector<8xf32> to vector<8x1xf32>
    %cst_2 = arith.constant 0.00104166672 : f32
    %4 = vector.broadcast %cst_2 : f32 to vector<8x1xf32>
    %5 = arith.mulf %3, %4 : vector<8x1xf32>
    %6 = vector.shape_cast %5 : vector<8x1xf32> to vector<8x1xf32>
    %7 = vector.broadcast %6 : vector<8x1xf32> to vector<8x128xf32>
    %8 = tpu.iota {dimensions = array<i32: 0>} : vector<8x128xi32>
    %cst_3 = arith.constant 0.000000e+00 : f32
    %9 = vector.broadcast %cst_3 : f32 to vector<8x128xf32>
    %c1_i32 = arith.constant 1 : i32
    %10 = tpu.dynamic_rotate %7 by %c1_i32 dim 0 : vector<8x128xf32>, i32 -> vector<8x128xf32>
    %c1_i32_4 = arith.constant 1 : i32
    %11 = vector.broadcast %c1_i32_4 : i32 to vector<8x128xi32>
    %12 = arith.cmpi sge, %8, %11 : vector<8x128xi32>
    %c9_i32 = arith.constant 9 : i32
    %13 = vector.broadcast %c9_i32 : i32 to vector<8x128xi32>
    %14 = arith.cmpi slt, %8, %13 : vector<8x128xi32>
    %15 = arith.andi %12, %14 : vector<8x128xi1>
    %c0_5 = arith.constant 0 : index
    %16 = memref.load %arg1[%c0_5] : memref<3xf32, #tpu.memory_space<smem>>
    %cst_6 = arith.constant 0.000000e+00 : f32
    %17 = vector.broadcast %cst_6 : f32 to vector<8x128xf32>
    %18 = arith.select %15, %10, %17 : vector<8x128xi1>, vector<8x128xf32>
    %19 = vector.broadcast %16 : f32 to vector<8x128xf32>
    %20 = arith.mulf %19, %18 : vector<8x128xf32>
    %21 = arith.addf %9, %20 : vector<8x128xf32>
    %c0_i32 = arith.constant 0 : i32
    %22 = vector.broadcast %c0_i32 : i32 to vector<8x128xi32>
    %23 = arith.cmpi sge, %8, %22 : vector<8x128xi32>
    %c8_i32 = arith.constant 8 : i32
    %24 = vector.broadcast %c8_i32 : i32 to vector<8x128xi32>
    %25 = arith.cmpi slt, %8, %24 : vector<8x128xi32>
    %26 = arith.andi %23, %25 : vector<8x128xi1>
    %c1 = arith.constant 1 : index
    %27 = memref.load %arg1[%c1] : memref<3xf32, #tpu.memory_space<smem>>
    %cst_7 = arith.constant 0.000000e+00 : f32
    %28 = vector.broadcast %cst_7 : f32 to vector<8x128xf32>
    %29 = arith.select %26, %7, %28 : vector<8x128xi1>, vector<8x128xf32>
    %30 = vector.broadcast %27 : f32 to vector<8x128xf32>
    %31 = arith.mulf %30, %29 : vector<8x128xf32>
    %32 = arith.addf %21, %31 : vector<8x128xf32>
    %c7_i32 = arith.constant 7 : i32
    %33 = tpu.dynamic_rotate %7 by %c7_i32 dim 0 : vector<8x128xf32>, i32 -> vector<8x128xf32>
    %c-1_i32 = arith.constant -1 : i32
    %34 = vector.broadcast %c-1_i32 : i32 to vector<8x128xi32>
    %35 = arith.cmpi sge, %8, %34 : vector<8x128xi32>
    %c7_i32_8 = arith.constant 7 : i32
    %36 = vector.broadcast %c7_i32_8 : i32 to vector<8x128xi32>
    %37 = arith.cmpi slt, %8, %36 : vector<8x128xi32>
    %38 = arith.andi %35, %37 : vector<8x128xi1>
    %c2 = arith.constant 2 : index
    %39 = memref.load %arg1[%c2] : memref<3xf32, #tpu.memory_space<smem>>
    %cst_9 = arith.constant 0.000000e+00 : f32
    %40 = vector.broadcast %cst_9 : f32 to vector<8x128xf32>
    %41 = arith.select %38, %33, %40 : vector<8x128xi1>, vector<8x128xf32>
    %42 = vector.broadcast %39 : f32 to vector<8x128xf32>
    %43 = arith.mulf %42, %41 : vector<8x128xf32>
    %44 = arith.addf %32, %43 : vector<8x128xf32>
    %45 = arith.negf %44 : vector<8x128xf32>
    %46 = math.exp %45 : vector<8x128xf32>
    %cst_10 = arith.constant 1.000000e+00 : f32
    %47 = vector.broadcast %cst_10 : f32 to vector<8x128xf32>
    %48 = arith.addf %47, %46 : vector<8x128xf32>
    %49 = arith.divf %47, %48 : vector<8x128xf32>
    %50 = vector.extract_strided_slice %49 {offsets = [0, 0], sizes = [8, 1], strides = [1, 1]} : vector<8x128xf32> to vector<8x1xf32>
    %51 = vector.broadcast %50 : vector<8x1xf32> to vector<8x960xf32>
    %52 = arith.mulf %1, %51 : vector<8x960xf32>
    %c0_11 = arith.constant 0 : index
    %c0_12 = arith.constant 0 : index
    %c0_13 = arith.constant 0 : index
    %53 = vector.load %arg3[%c0_11, %c0_12, %c0_13] : memref<1x8x960xf32, #tpu.memory_space<vmem>>, vector<1x8x960xf32>
    %54 = vector.shape_cast %53 : vector<1x8x960xf32> to vector<8x960xf32>
    %55 = vector.shape_cast %52 : vector<8x960xf32> to vector<1x8x960xf32>
    tpu.vector_store %arg3[%c0_11, %c0_12, %c0_13], %55 {strides = array<i32>} : memref<1x8x960xf32, #tpu.memory_space<vmem>>, vector<1x8x960xf32>,
    return
  }
  func.func @transform_0(%arg0: i32) -> i32 {
    %c0_i32 = arith.constant 0 : i32
    %c0_i32_0 = arith.constant 0 : i32
    return %c0_i32 : i32
  }
  func.func @transform_1(%arg0: i32) -> (i32, i32, i32) {
    %c0_i32 = arith.constant 0 : i32
    %c0_i32_0 = arith.constant 0 : i32
    %c0_i32_1 = arith.constant 0 : i32
    return %arg0, %c0_i32, %c0_i32_0 : i32, i32, i32
  }
  func.func @transform_2(%arg0: i32) -> (i32, i32, i32) {
    %c0_i32 = arith.constant 0 : i32
    %c0_i32_0 = arith.constant 0 : i32
    %c0_i32_1 = arith.constant 0 : i32
    return %arg0, %c0_i32, %c0_i32_0 : i32, i32, i32
  }
}

</mosaic_0001>

<llo_original>
// kernel: cross_slice_attention.1
$region0: #{cross_slice_attention.1}
  #allocation0 [shape = 'u32[]', space=smem, size = 0x4, offset = 0x4, fixed_abs, tag = 'smem constant byte address 0x4 - core index']
  #allocation1 [shape = 'u32[144,128]{1,0:T(1,128)}', space=vmem, size = 0x12000, scoped, tag = 'internal scratch']
  %s0 = inlined_call_operand.vmem [shape: f32[3], index: 0, kind: input, shape index: {}]
  %s1 = inlined_call_operand.vmem [shape: f32[2,8,960], index: 1, kind: input, shape index: {}]
  %s2 = inlined_call_operand.vmem [shape: f32[2,8,960], index: 2, kind: output, shape index: {}]
  %s3 = sld [smem:[#allocation0]]
  $region45: #{cross_slice_attention.1} parent=0
    _
  %s5 = ssub.s32 1, %s3
  %s6 = scalar_select 0, %s5, %s3
  $region1: #{cross_slice_attention.1} parent=0
    #allocation2 [shape = 'u8[512]{0}', space=smem, size = 0x200, scoped, tag = 'input window, operand 0, single buffered']
    #allocation3 [shape = 's32[2]{0}', space=sflag, size = 0x8, scoped, tag = 'scoped memory for cross_slice_attention.1']
    %7 = vsyncpa [#allocation3], 0
    loop: start=0, step=1, limit=4
    $region2: #{cross_slice_attention.1} parent=1 // loop_pre_header
      _
    $region3: #{cross_slice_attention.1} parent=1 // loop_header
      %s9 = sphi 0, %s13
      %p10 = scmp.ge.s32.totalorder %s9, 4
      %s17 = sphi 0, %s17
      %s19 = sphi 0, %s17
      %s20 = sphi 0, %s19
      %s34 = sphi 0, %s20
      %s40 = sphi 0, %s42
      %s43 = sphi 0, %s40
      %s44 = sphi 0, %s43
      %s60 = sphi 0, %s44
      %s66 = sphi 0, %s68
      %s69 = sphi 0, %s66
      %s70 = sphi 0, %s69
      %s86 = sphi 0, %s70
    $region4: #{cross_slice_attention.1} parent=1 // loop_header_branch
      %12 = sbr.rel (%p10) target = $region8
    $region5: #{cross_slice_attention.1} parent=1 // loop_body
      %s14 = ssub.s32 %s9, 1
      %s15 = ssub.s32 %s9, 2
      %s16 = sadd.s32 %s9, 1
      %s18 = sadd.s32 %s17, 1
      %p21 = scmp.eq.s32.totalorder %s9, 1
      %p22 = scmp.ne.s32.totalorder %s17, %s19
      %p23 = scmp.eq.s32.totalorder %s9, 0
      %p24 = por %p22, %p23
      %p25 = scmp.ne.s32.totalorder %s17, %s19
      %p26 = scmp.eq.s32.totalorder %s14, 1
      %p27 = por %p25, %p26
      %p28 = scmp.ne.s32.totalorder %s19, %s20
      %p29 = scmp.eq.s32.totalorder %s14, 0
      %p30 = por %p28, %p29
      %p31 = scmp.ne.s32.totalorder %s19, %s20
      %p32 = scmp.eq.s32.totalorder %s15, 1
      %p33 = por %p31, %p32
      %p35 = scmp.ne.s32.totalorder %s20, %s34
      %p36 = scmp.eq.s32.totalorder %s15, 0
      %p37 = por %p35, %p36
      %s38 = ssub.s32 %s9, %s16
      %p39 = scmp.eq.s32.totalorder %s38, 0
      %s41 = sadd.s32 %s40, 1
      %s42 = scalar_select %p39, %s40, %s41
      %p45 = pneg %p39
      %p46 = scmp.eq.s32.totalorder %s9, 1
      %p47 = por %p45, %p46
      %p48 = scmp.ne.s32.totalorder %s40, %s43
      %p49 = scmp.eq.s32.totalorder %s9, 0
      %p50 = por %p48, %p49
      %p51 = scmp.ne.s32.totalorder %s40, %s43
      %p52 = scmp.eq.s32.totalorder %s14, 1
      %p53 = por %p51, %p52
      %p54 = scmp.ne.s32.totalorder %s43, %s44
      %p55 = scmp.eq.s32.totalorder %s14, 0
      %p56 = por %p54, %p55
      %p57 = scmp.ne.s32.totalorder %s43, %s44
      %p58 = scmp.eq.s32.totalorder %s15, 1
      %p59 = por %p57, %p58
      %p61 = scmp.ne.s32.totalorder %s44, %s60
      %p62 = scmp.eq.s32.totalorder %s15, 0
      %p63 = por %p61, %p62
      %s64 = ssub.s32 %s9, %s16
      %p65 = scmp.eq.s32.totalorder %s64, 0
      %s67 = sadd.s32 %s66, 1
      %s68 = scalar_select %p65, %s66, %s67
      %p71 = pneg %p65
      %p72 = scmp.eq.s32.totalorder %s9, 1
      %p73 = por %p71, %p72
      %p74 = scmp.ne.s32.totalorder %s66, %s69
      %p75 = scmp.eq.s32.totalorder %s9, 0
      %p76 = por %p74, %p75
      %p77 = scmp.ne.s32.totalorder %s66, %s69
      %p78 = scmp.eq.s32.totalorder %s14, 1
      %p79 = por %p77, %p78
      %p80 = scmp.ne.s32.totalorder %s69, %s70
      %p81 = scmp.eq.s32.totalorder %s14, 0
      %p82 = por %p80, %p81
      %p83 = scmp.ne.s32.totalorder %s69, %s70
      %p84 = scmp.eq.s32.totalorder %s15, 1
      %p85 = por %p83, %p84
      %p87 = scmp.ne.s32.totalorder %s70, %s86
      %p88 = scmp.eq.s32.totalorder %s15, 0
      %p89 = por %p87, %p88
      %p90 = scmp.le.s32.totalorder 1, %s9
      %p91 = scmp.lt.s32.totalorder %s9, 3
      %p92 = pnand %p90, %p91
      %p93 = pneg %p92
      // Predicated region
      $region9: #{cross_slice_attention.1} parent=5 // pred_check
        _
      $region10: #{cross_slice_attention.1} parent=5 // pred_check_branch
        %95 = sbr.rel (%p92) target = $region12
      $region11: #{cross_slice_attention.1} parent=5 // pred_region
        %s96 = ssub.s32 %s9, 1
        // Predicated region
        $region13: #{cross_slice_attention.1} parent=11 // pred_check
          %p97 = pneg %p30
        $region14: #{cross_slice_attention.1} parent=11 // pred_check_branch
          %99 = sbr.rel (%p97) target = $region16
        $region15: #{cross_slice_attention.1} parent=11 // pred_region
          %s101 = ssub.s32 16, 16
          %102 = vsyncadd [#allocation3], %s101
          %s104 = sshll.u32 %s0, 4
          %s105 = int_to_ptr.vmem [resolvable:$true] %s104
          %107 = dma.vmem_to_smem %s105, 16, [#allocation2], [#allocation3]
        $region16: #{cross_slice_attention.1} parent=11 // pred_fallthru
          _
      $region12: #{cross_slice_attention.1} parent=5 // pred_fallthru
        _
      %p108 = scmp.lt.s32.totalorder %s9, 2
      // Predicated region
      $region17: #{cross_slice_attention.1} parent=5 // pred_check
        %p109 = pneg %p108
      $region18: #{cross_slice_attention.1} parent=5 // pred_check_branch
        %111 = sbr.rel (%p109) target = $region20
      $region19: #{cross_slice_attention.1} parent=5 // pred_region
        // Predicated region
        $region21: #{cross_slice_attention.1} parent=19 // pred_check
          %p112 = pneg %p50
        $region22: #{cross_slice_attention.1} parent=19 // pred_check_branch
          %114 = sbr.rel (%p112) target = $region24
        $region23: #{cross_slice_attention.1} parent=19 // pred_region
          %p115 = scmp.lt.s32.totalorder %s9, 1
          %s116 = scalar_select %p115, %s9, 1
          %s117 = smul.addr %s116, 8
          %s118 = smul.addr %s117, 8
          %s119 = scalar_lea.vmem %s1, %s118
        $region24: #{cross_slice_attention.1} parent=19 // pred_fallthru
          _
      $region20: #{cross_slice_attention.1} parent=5 // pred_fallthru
        _
      %p120 = scmp.le.s32.totalorder 1, %s9
      %p121 = scmp.lt.s32.totalorder %s9, 3
      %p122 = pnand %p120, %p121
      %p123 = pneg %p122
      // Predicated region
      $region25: #{cross_slice_attention.1} parent=5 // pred_check
        _
      $region26: #{cross_slice_attention.1} parent=5 // pred_check_branch
        %125 = sbr.rel (%p122) target = $region28
      $region27: #{cross_slice_attention.1} parent=5 // pred_region
        %s126 = ssub.s32 %s9, 1
        // Predicated region
        $region29: #{cross_slice_attention.1} parent=27 // pred_check
          %p127 = pneg %p30
        $region30: #{cross_slice_attention.1} parent=27 // pred_check_branch
          %129 = sbr.rel (%p127) target = $region32
        $region31: #{cross_slice_attention.1} parent=27 // pred_region
          %130 = dma.done [#allocation3], 16
        $region32: #{cross_slice_attention.1} parent=27 // pred_fallthru
          _
        %131 = sfence
        %p132 = pneg %p30
        %p133 = pneg %p27
        %p134 = scmp.lt.s32.totalorder %s14, 1
        %s135 = scalar_select %p134, %s14, 1
        %s136 = smul.addr %s135, 8
        %s137 = smul.addr %s136, 8
        %s138 = scalar_lea.vmem %s1, %s137
        %p139 = pneg %p56
        %p140 = pneg %p53
        %p141 = pneg %p82
        %p142 = pneg %p79
        %p143 = scmp.lt.s32.totalorder %s14, 1
        %s144 = scalar_select %p143, %s14, 1
        %s145 = smul.addr %s144, 8
        %s146 = smul.addr %s145, 8
        %s147 = scalar_lea.vmem %s2, %s146
        %p148 = scmp.lt.s32.totalorder %s14, 1
        %s149 = scalar_select %p148, %s14, 1
        %s150 = smul.addr %s149, 8
        %s151 = smul.addr %s150, 8
        %s152 = scalar_lea.vmem %s1, %s151
        %p153 = scmp.lt.s32.totalorder %s14, 1
        %s154 = scalar_select %p153, %s14, 1
        %s155 = smul.addr %s154, 8
        %s156 = smul.addr %s155, 8
        %s157 = scalar_lea.vmem %s2, %s156
        %v158 = vld [vmem:[%s152] sm:$0xff]
        %v159 = vld [vmem:[%s152 + $0x8] sm:$0xff]
        %v160 = vld [vmem:[%s152 + $0x10] sm:$0xff]
        %v161 = vld [vmem:[%s152 + $0x18] sm:$0xff]
        %v162 = vld [vmem:[%s152 + $0x20] sm:$0xff]
        %v163 = vld [vmem:[%s152 + $0x28] sm:$0xff]
        %v164 = vld [vmem:[%s152 + $0x30] sm:$0xff]
        %v165 = vld [vmem:[%s152 + $0x38] sm:$0xff]
        %v166 = vadd.f32 %v158, %v159
        %v167 = vadd.f32 %v166, %v160
        %v168 = vadd.f32 %v167, %v161
        %v169 = vadd.f32 %v168, %v162
        %v170 = vadd.f32 %v169, %v163
        %v171 = vadd.f32 %v170, %v164
        %vm172 = vcmask 523264
        %v173 = vsel %vm172, %v165, 0.0
        %v174 = vadd.f32 %v171, %v173
        %175 = vadd.xlane.f32.xlu0 %v174
        %v176 = vpop.xlane.xlu0 %175
        %v177 = vmul.f32 %v176, 0.0010416667
        %v178 = vlaneseq
        %v179 = vshrl.u32 %v178, 7
        %v180 = vrot.slane %v177, 7
        %vm181 = vcmp.ge.s32.totalorder %v179, 1
        %vm182 = vcmp.lt.s32.totalorder %v179, 9
        %vm183 = vmand %vm181, %vm182
        %s184 = sld [smem:[#allocation2]]
        %v185 = vsel %vm183, %v180, 0.0
        %v186 = vstv %s184
        %v187 = vmul.f32 %v186, %v185
        %v188 = vadd.f32 %v187, 0.0
        %vm189 = vcmp.ge.s32.totalorder %v179, 0
        %vm190 = vcmp.lt.s32.totalorder %v179, 8
        %vm191 = vmand %vm189, %vm190
        %s192 = sld [smem:[#allocation2 + $0x1]]
        %v193 = vsel %vm191, %v177, 0.0
        %v194 = vstv %s192
        %v195 = vmul.f32 %v194, %v193
        %v196 = vadd.f32 %v188, %v195
        %v197 = vrot.slane %v177, 1
        %vm198 = vcmp.ge.s32.totalorder %v179, 4294967295
        %vm199 = vcmp.lt.s32.totalorder %v179, 7
        %vm200 = vmand %vm198, %vm199
        %s201 = sld [smem:[#allocation2 + $0x2]]
        %v202 = vsel %vm200, %v197, 0.0
        %v203 = vstv %s201
        %v204 = vmul.f32 %v203, %v202
        %v205 = vadd.f32 %v196, %v204
        %v206 = vxor.u32 %v205, 2147483648
        %v207 = vmul.f32 %v206, 1.442695
        %v208 = vpow.pop %v207
        %v209 = vadd.f32 %v208, 1.0
        %v210 = vrcp.pop %v209
        %v211 = vmul.f32 1.0, %v210
        %213 = vset.pattern.permute.xlu0 0
        %214 = vperm.xlu0 %213, %v211
        %v215 = vpop.permute.xlu0 %214
        %v217 = vmul.f32 %v158, %v215
        %v218 = vmul.f32 %v159, %v215
        %v219 = vmul.f32 %v160, %v215
        %v220 = vmul.f32 %v161, %v215
        %v221 = vmul.f32 %v162, %v215
        %v222 = vmul.f32 %v163, %v215
        %v223 = vmul.f32 %v164, %v215
        %v224 = vmul.f32 %v165, %v215
        %225 = vst [vmem:[%s157] sm:$0xff] %v217
        %226 = vst [vmem:[%s157 + $0x8] sm:$0xff] %v218
        %227 = vst [vmem:[%s157 + $0x10] sm:$0xff] %v219
        %228 = vst [vmem:[%s157 + $0x18] sm:$0xff] %v220
        %229 = vst [vmem:[%s157 + $0x20] sm:$0xff] %v221
        %230 = vst [vmem:[%s157 + $0x28] sm:$0xff] %v222
        %231 = vst [vmem:[%s157 + $0x30] sm:$0xff] %v223
        %232 = vst.msk [vmem:[%s157 + $0x38] sm:$0xff] %vm172, %v224
        %p233 = scmp.lt.s32.totalorder %s14, 1
        %s234 = scalar_select %p233, %s14, 1
        %s235 = smul.addr %s234, 8
        %s236 = smul.addr %s235, 8
        %s237 = scalar_lea.vmem %s2, %s236
        // Predicated region
        $region33: #{cross_slice_attention.1} parent=27 // pred_check
          %p238 = pneg %p79
        $region34: #{cross_slice_attention.1} parent=27 // pred_check_branch
          %240 = sbr.rel (%p238) target = $region36
        $region35: #{cross_slice_attention.1} parent=27 // pred_region
          _
        $region36: #{cross_slice_attention.1} parent=27 // pred_fallthru
          _
      $region28: #{cross_slice_attention.1} parent=5 // pred_fallthru
        _
      %p241 = scmp.le.s32.totalorder 2, %s9
      // Predicated region
      $region37: #{cross_slice_attention.1} parent=5 // pred_check
        %p242 = pneg %p241
      $region38: #{cross_slice_attention.1} parent=5 // pred_check_branch
        %244 = sbr.rel (%p242) target = $region40
      $region39: #{cross_slice_attention.1} parent=5 // pred_region
        %s245 = ssub.s32 %s9, 2
        // Predicated region
        $region41: #{cross_slice_attention.1} parent=39 // pred_check
          %p246 = pneg %p85
        $region42: #{cross_slice_attention.1} parent=39 // pred_check_branch
          %248 = sbr.rel (%p246) target = $region44
        $region43: #{cross_slice_attention.1} parent=39 // pred_region
          %p249 = scmp.lt.s32.totalorder %s15, 1
          %s250 = scalar_select %p249, %s15, 1
          %s251 = smul.addr %s250, 8
          %s252 = smul.addr %s251, 8
          %s253 = scalar_lea.vmem %s2, %s252
        $region44: #{cross_slice_attention.1} parent=39 // pred_fallthru
          _
      $region40: #{cross_slice_attention.1} parent=5 // pred_fallthru
        _
    $region6: #{cross_slice_attention.1} parent=1 // loop_footer
      %s13 = sadd.s32 1, %s9
    $region7: #{cross_slice_attention.1} parent=1 // loop_footer_branch
      %8 = sbr.rel target = $region3
    $region8: #{cross_slice_attention.1} parent=1 // loop_exit
      _
    %254 = vsyncpa [#allocation3], 1
    %s255 = scalar_lea.sflag [#allocation3], 1
    %256 = vsyncpa %s255, 1

</llo_original>
